<compile_context>
chip_gen: v6e
topology: v6e:2x2x1
jax: 0.10.0
libtpu: 0.0.40
codegen_flags: <defaults>
</compile_context>

<pallas_src>
import jax
import jax.numpy as jnp
from jax.experimental import pallas as pl
from jax.experimental.pallas import tpu as pltpu


# ----------------------------------------------------------------------------
# Fixed parameter vectors (deterministic, from ParamVecs in the module).
# ----------------------------------------------------------------------------
_ZERO  = [1, 1, 1, 1, 1, 1, 1, 1, 1, 1, 1, 1, 1, 1, 1, 1, -1, -1, -1, 1, 1, 1, -1, -1, 1, -1, -1, 1, -1, -1, 1, 1, 1, -1, -1, -1, -1, 1, 1, 1, -1, -1, -1, -1, 1, 1, 1, -1, -1, -1, -1, 1, 1, 1, -1, -1, 1, -1, -1, 1, -1, -1, 1, 1, 1, -1, -1, -1, 1, 1, 1, 1, 1, 1, 1, 1, 1, 1, 1, 1, 1, 1, 1, 1]
_ONE   = [1, 1, 1, -1, -1, 1, 1, 1, 1, -1, -1, -1, 1, 1, 1, -1, -1, -1, -1, 1, 1, 1, 1, 1, -1, -1, 1, 1, 1, 1, 1, -1, -1, 1, 1, 1, 1, 1, -1, -1, 1, 1, 1, 1, 1, -1, -1, 1, 1, 1, 1, 1, -1, -1, 1, 1, 1, 1, 1, -1, -1, 1, 1, 1, -1, -1, -1, -1, -1, -1, 1, 1, 1, 1, 1, 1, 1, 1, 1, 1, 1, 1, 1, 1]
_TWO   = [1, 1, 1, 1, 1, 1, 1, 1, 1, 1, 1, 1, 1, 1, 1, -1, -1, -1, -1, -1, 1, -1, -1, 1, 1, 1, -1, -1, -1, 1, 1, 1, 1, -1, -1, 1, 1, 1, 1, -1, -1, 1, 1, 1, -1, -1, -1, 1, 1, 1, -1, -1, 1, 1, 1, 1, -1, -1, 1, 1, 1, 1, 1, -1, -1, -1, -1, -1, -1, -1, 1, 1, 1, 1, 1, 1, 1, 1, 1, 1, 1, 1, 1, 1]
_THREE = [-1, -1, -1, -1, -1, -1, -1, 1, 1, 1, 1, 1, -1, -1, 1, 1, 1, 1, -1, -1, 1, 1, 1, 1, -1, -1, 1, 1, 1, 1, -1, -1, -1, -1, 1, 1, 1, 1, 1, 1, -1, -1, 1, 1, 1, 1, 1, -1, -1, 1, 1, 1, 1, 1, -1, -1, -1, -1, 1, 1, 1, -1, -1, 1, -1, -1, -1, -1, -1, 1, 1, 1, 1, 1, 1, 1, 1, 1, 1, 1, 1, 1, 1, 1]
_FOUR  = [1, 1, 1, 1, 1, 1, 1, 1, 1, 1, 1, 1, 1, 1, 1, 1, 1, 1, 1, 1, 1, 1, -1, -1, 1, 1, -1, -1, 1, -1, -1, 1, 1, -1, -1, -1, -1, -1, 1, 1, -1, -1, -1, -1, 1, 1, 1, -1, -1, -1, -1, 1, 1, 1, -1, -1, -1, -1, 1, 1, -1, -1, -1, 1, -1, -1, -1, -1, -1, -1, 1, 1, 1, 1, 1, -1, -1, 1, 1, 1, 1, 1, -1, -1]
_FIVE  = [1, 1, 1, 1, 1, 1, 1, 1, 1, 1, 1, 1, 1, 1, -1, -1, -1, -1, -1, -1, -1, -1, -1, 1, 1, 1, 1, 1, -1, -1, 1, 1, 1, 1, 1, 1, -1, -1, -1, -1, 1, 1, 1, 1, -1, -1, -1, -1, 1, 1, 1, 1, 1, 1, -1, -1, -1, -1, 1, 1, 1, -1, -1, 1, -1, -1, -1, -1, -1, 1, 1, 1, 1, 1, 1, 1, 1, 1, 1, 1, 1, 1, 1, 1]
_SIX   = [1, 1, -1, -1, -1, -1, 1, 1, -1, -1, 1, 1, 1, 1, -1, -1, 1, 1, 1, 1, 1, -1, -1, 1, 1, 1, 1, 1, -1, -1, -1, -1, -1, -1, 1, -1, -1, -1, 1, 1, -1, -1, -1, -1, 1, 1, 1, -1, -1, -1, -1, 1, 1, 1, -1, -1, -1, -1, -1, 1, 1, -1, -1, 1, -1, -1, -1, -1, -1, 1, 1, 1, 1, 1, 1, 1, 1, 1, 1, 1, 1, 1, 1, 1]
_SEVEN = [-1, -1, -1, -1, -1, -1, -1, 1, 1, 1, 1, 1, -1, -1, 1, 1, 1, 1, 1, -1, -1, 1, 1, 1, 1, -1, -1, 1, 1, 1, 1, -1, -1, 1, 1, 1, 1, 1, -1, -1, 1, 1, 1, 1, -1, -1, 1, 1, 1, 1, 1, -1, -1, 1, 1, 1, 1, 1, -1, -1, 1, 1, 1, 1, 1, -1, -1, 1, 1, 1, 1, 1, 1, 1, 1, 1, 1, 1, 1, 1, 1, 1, 1, 1]
_EIGHT = [1, -1, -1, -1, -1, -1, 1, -1, -1, 1, 1, 1, -1, -1, -1, -1, 1, 1, 1, -1, -1, -1, -1, 1, 1, 1, -1, -1, 1, -1, -1, -1, -1, -1, 1, -1, -1, 1, 1, 1, -1, -1, -1, -1, 1, 1, 1, -1, -1, -1, -1, 1, 1, 1, -1, -1, -1, -1, 1, 1, 1, -1, -1, 1, -1, -1, -1, -1, -1, 1, 1, 1, 1, 1, 1, 1, 1, 1, 1, 1, 1, 1, 1, 1]
_NINE  = [1, -1, -1, -1, -1, -1, 1, -1, -1, 1, 1, -1, -1, -1, -1, -1, 1, 1, 1, -1, -1, -1, -1, 1, 1, 1, -1, -1, -1, -1, 1, 1, -1, -1, -1, 1, -1, -1, -1, -1, -1, -1, 1, 1, 1, 1, 1, -1, -1, 1, 1, 1, 1, 1, -1, -1, 1, 1, 1, 1, -1, -1, 1, 1, -1, -1, -1, -1, 1, 1, 1, 1, 1, 1, 1, 1, 1, 1, 1, 1, 1, 1, 1, 1]

PARAM_VECS = jnp.asarray(
    [_ZERO, _ONE, _TWO, _THREE, _FOUR, _FIVE, _SIX, _SEVEN, _EIGHT, _NINE],
    dtype=jnp.float32,
)  # (K, D) = (10, 84)

D = 84          # feature dim; every prototype entry is +/-1 -> ||p_k||^2 == 84
K = 10          # number of prototypes (real output width)
K_PAD = 128     # lane-aligned MXU width, used only inside the kernel


# ----------------------------------------------------------------------------
# Pallas kernel: per batch-tile squared-distance via the MXU decomposition.
# Output block is (tile_n, K); epilogue runs only on the real K columns.
# ----------------------------------------------------------------------------
def _gaussian_kernel(x_ref, pt_ref, o_ref):
    x = x_ref[...]                                        # (tile_n, D)   f32
    pt = pt_ref[...]                                      # (D, K_PAD)    f32
    xsq = jnp.sum(x * x, axis=-1, keepdims=True)          # (tile_n, 1)
    xp = jnp.dot(x, pt,
                 precision=jax.lax.Precision.HIGHEST,
                 preferred_element_type=jnp.float32)      # (tile_n, K_PAD), MXU
    # Epilogue only on the real K columns (padded columns never leave vregs).
    sq = xsq + jnp.float32(D) - 2.0 * xp[:, :K]           # (tile_n, K)
    # Clamp tiny negatives from f32 cancellation before sqrt.
    o_ref[...] = jnp.sqrt(jnp.maximum(sq, 0.0))


def _xla_reference(x: jax.Array, param_vecs: jax.Array) -> jax.Array:
    return jnp.sqrt(jnp.sum((x[:, None, :] - param_vecs[None, :, :]) ** 2, axis=-1))


def gaussian_forward(x: jax.Array,
                     param_vecs: jax.Array = PARAM_VECS,
                     tile_n: int = 2048,
                     force_pallas: bool = False) -> jax.Array:
    """x: (N, 84) float32 -> (N, 10) float32 Euclidean distances."""
    n, d = x.shape
    k, d2 = param_vecs.shape
    assert d == d2 == D, f"feature dim mismatch: {d} vs {d2}"
    assert k == K

    x = x.astype(jnp.float32)

    # Tiny batches: one ragged sub-tile; launch overhead dominates -> plain XLA.
    if n < 512 and not force_pallas:
        return _xla_reference(x, param_vecs)

    # Compile-time constant: transposed, zero-padded prototypes (D, K_PAD).
    # Padded columns contribute 0 to the dot and are never stored to HBM.
    p_t = jnp.zeros((d, K_PAD), dtype=jnp.float32).at[:, :k].set(param_vecs.T)

    # --- batch-tile selection -------------------------------------------------
    # Cap at 4096 so the double-buffered VMEM footprint stays within the v5e
    # default scoped-VMEM limit (v6e/v7x have more headroom).
    tile_n = int(min(tile_n, 4096))
    tile_n = max(256, (tile_n // 256) * 256)
    if n < 2 * tile_n:
        if n >= 512:
            # Keep grid >= 2 so the "parallel" axis spans both TCs on v7x.
            tile_n = max(256, ((pl.cdiv(n, 2) + 255) // 256) * 256)
        else:
            # Forced-Pallas tiny batch: single minimal 8-aligned tile.
            tile_n = max(8, ((n + 7) // 8) * 8)
    grid_n = pl.cdiv(n, tile_n)

    return pl.pallas_call(
        _gaussian_kernel,
        out_shape=jax.ShapeDtypeStruct((n, K), jnp.float32),
        grid=(grid_n,),
        in_specs=[
            pl.BlockSpec((tile_n, d), lambda i: (i, 0)),     # x: tiled over batch
            pl.BlockSpec((d, K_PAD), lambda i: (0, 0)),      # prototypes: resident
        ],
        out_specs=pl.BlockSpec((tile_n, K), lambda i: (i, 0)),  # (N, 10) directly
        compiler_params=pltpu.CompilerParams(
            dimension_semantics=("parallel",),   # megacore sharding on v7x
        ),
    )(x, p_t)


if __name__ == "__main__":
    key = jax.random.PRNGKey(0)

    # Small shape implied by the module's forward: (batch, 84).
    x_small = jax.random.normal(key, (8, 84), dtype=jnp.float32)
    out_small = jax.block_until_ready(
        gaussian_forward(x_small, force_pallas=True))       # exercise the kernel
    ref_small = _xla_reference(x_small, PARAM_VECS)
    assert out_small.shape == (8, 10), out_small.shape
    assert jnp.allclose(out_small, ref_small, rtol=1e-4, atol=1e-3), \
        "mismatch vs reference (small batch)"

    # Slightly larger batch: exercises the multi-tile grid + partial last tile.
    x_big = jax.random.normal(jax.random.PRNGKey(0), (640, 84), dtype=jnp.float32)
    out_big = jax.block_until_ready(gaussian_forward(x_big))
    ref_big = _xla_reference(x_big, PARAM_VECS)
    assert out_big.shape == (640, 10), out_big.shape
    assert jnp.allclose(out_big, ref_big, rtol=1e-4, atol=1e-3), \
        "mismatch vs reference (multi-tile batch)"

    print("KERNEL_OK")
</pallas_src>

<mosaic_0001>
module attributes {stable_mosaic.version = 11 : i64} {
  func.func @_gaussian_kernel(%arg0: i32, %arg1: memref<8x84xf32, #tpu.memory_space<vmem>>, %arg2: memref<84x128xf32, #tpu.memory_space<vmem>>, %arg3: memref<8x10xf32, #tpu.memory_space<vmem>>) attributes {dimension_semantics = [#tpu.dimension_semantics<parallel>], iteration_bounds = array<i64: 1>, scalar_prefetch = 0 : i64, scratch_operands = 0 : i64, tpu.core_type = #tpu.core_type<tc>, window_params = [{transform_indices = @transform_0, window_bounds = array<i64: 8, 84>}, {pipeline_mode = #tpu.pipeline_mode<synchronous>, transform_indices = @transform_1, window_bounds = array<i64: 84, 128>}, {transform_indices = @transform_2, window_bounds = array<i64: 8, 10>}]} {
    %c0 = arith.constant 0 : index
    %c0_0 = arith.constant 0 : index
    %0 = vector.load %arg1[%c0, %c0_0] : memref<8x84xf32, #tpu.memory_space<vmem>>, vector<8x84xf32>
    %c0_1 = arith.constant 0 : index
    %c0_2 = arith.constant 0 : index
    %1 = vector.load %arg2[%c0_1, %c0_2] : memref<84x128xf32, #tpu.memory_space<vmem>>, vector<84x128xf32>
    %2 = arith.mulf %0, %0 : vector<8x84xf32>
    %cst = arith.constant dense<0.000000e+00> : vector<8xf32>
    %3 = vector.multi_reduction <add>, %2, %cst [1] : vector<8x84xf32> to vector<8xf32>
    %4 = vector.shape_cast %3 : vector<8xf32> to vector<8x1xf32>
    %cst_3 = arith.constant dense<0.000000e+00> : vector<8x128xf32>
    %5 = tpu.matmul %0, %1, %cst_3 {dimension_numbers = #tpu.dot_dimension_numbers<[1], [0], [0], [1], [0, 0, 1, 1], [], []>, precision = #tpu.contract_precision<fp32>} : vector<8x84xf32>, vector<84x128xf32>, vector<8x128xf32> -> vector<8x128xf32>
    %cst_4 = arith.constant 8.400000e+01 : f32
    %6 = vector.broadcast %cst_4 : f32 to vector<8x1xf32>
    %7 = arith.addf %4, %6 : vector<8x1xf32>
    %8 = vector.extract_strided_slice %5 {offsets = [0, 0], sizes = [8, 10], strides = [1, 1]} : vector<8x128xf32> to vector<8x10xf32>
    %cst_5 = arith.constant 2.000000e+00 : f32
    %9 = vector.broadcast %cst_5 : f32 to vector<8x10xf32>
    %10 = arith.mulf %9, %8 : vector<8x10xf32>
    %11 = vector.broadcast %7 : vector<8x1xf32> to vector<8x10xf32>
    %12 = arith.subf %11, %10 : vector<8x10xf32>
    %cst_6 = arith.constant 0.000000e+00 : f32
    %13 = vector.broadcast %cst_6 : f32 to vector<8x10xf32>
    %14 = arith.maximumf %12, %13 : vector<8x10xf32>
    %15 = math.sqrt %14 : vector<8x10xf32>
    %c0_7 = arith.constant 0 : index
    %c0_8 = arith.constant 0 : index
    %16 = vector.load %arg3[%c0_7, %c0_8] : memref<8x10xf32, #tpu.memory_space<vmem>>, vector<8x10xf32>
    tpu.vector_store %arg3[%c0_7, %c0_8], %15 {strides = array<i32>} : memref<8x10xf32, #tpu.memory_space<vmem>>, vector<8x10xf32>,
    return
  }
  func.func @transform_0(%arg0: i32) -> (i32, i32) {
    %c0_i32 = arith.constant 0 : i32
    %c0_i32_0 = arith.constant 0 : i32
    return %arg0, %c0_i32 : i32, i32
  }
  func.func @transform_1(%arg0: i32) -> (i32, i32) {
    %c0_i32 = arith.constant 0 : i32
    %c0_i32_0 = arith.constant 0 : i32
    %c0_i32_1 = arith.constant 0 : i32
    return %c0_i32, %c0_i32_0 : i32, i32
  }
  func.func @transform_2(%arg0: i32) -> (i32, i32) {
    %c0_i32 = arith.constant 0 : i32
    %c0_i32_0 = arith.constant 0 : i32
    return %arg0, %c0_i32 : i32, i32
  }
}

</mosaic_0001>

<llo_original>
// kernel: tpu_custom_call.1
$region0: #{tpu_custom_call.1}
  #allocation0 [shape = 'u32[]', space=smem, size = 0x4, offset = 0x4, fixed_abs, tag = 'smem constant byte address 0x4 - core index']
  #allocation1 [shape = 'u32[144,128]{1,0:T(1,128)}', space=vmem, size = 0x12000, scoped, tag = 'internal scratch']
  %s0 = inlined_call_operand.hbm [shape: f32[8,84], index: 0, kind: input, shape index: {}]
  %s1 = inlined_call_operand.hbm [shape: f32[84,128], index: 1, kind: input, shape index: {}]
  %s2 = inlined_call_operand.hbm [shape: f32[8,10], index: 2, kind: output, shape index: {}]
  %s3 = sld [smem:[#allocation0]]
  $region26: #{tpu_custom_call.1} parent=0
    _
  %s5 = ssub.s32 1, %s3
  %s6 = scalar_select 0, %s5, %s3
  $region1: #{tpu_custom_call.1} parent=0
    #allocation2 [shape = 'u8[4096]{0}', space=vmem, size = 0x1000, scoped, tag = 'input window, operand 0, single buffered']
    #allocation3 [shape = 's32[1]{0}', space=sflag, size = 0x4, scoped, tag = 'scoped memory for tpu_custom_call.1']
    #allocation4 [shape = 's32[1]{0}', space=sflag, size = 0x4, scoped, tag = 'scoped memory for tpu_custom_call.1']
    #allocation5 [shape = 'u8[45056]{0}', space=vmem, size = 0xb000, scoped, tag = 'input window, operand 1, single buffered']
    #allocation6 [shape = 's32[1]{0}', space=sflag, size = 0x4, scoped, tag = 'scoped memory for tpu_custom_call.1']
    #allocation7 [shape = 'u8[4096]{0}', space=vmem, size = 0x1000, scoped, tag = 'output window, operand 0, single buffered']
    %7 = vsyncpa [#allocation3], 0
    %8 = vsyncpa [#allocation6], 0
    %9 = vsyncpa [#allocation4], 0
    // Predicated region
    $region2: #{tpu_custom_call.1} parent=1 // pred_check
      _
    $region3: #{tpu_custom_call.1} parent=1 // pred_check_branch
      %11 = sbr.rel (0) target = $region5
    $region4: #{tpu_custom_call.1} parent=1 // pred_region
      %s13 = ssub.s32 128, 128
      %14 = vsyncadd [#allocation3], %s13
      %s16 = sshll.u32 [#allocation2], 4
      %s17 = int_to_ptr.vmem [resolvable:$true] %s16
      %19 = dma.hbm_to_vmem [thread:$0]  %s0, 128, %s17, [#allocation3]
    $region5: #{tpu_custom_call.1} parent=1 // pred_fallthru
      _
    // Predicated region
    $region6: #{tpu_custom_call.1} parent=1 // pred_check
      _
    $region7: #{tpu_custom_call.1} parent=1 // pred_check_branch
      %21 = sbr.rel (0) target = $region9
    $region8: #{tpu_custom_call.1} parent=1 // pred_region
      %s23 = ssub.s32 1408, 1408
      %24 = vsyncadd [#allocation6], %s23
      %s25 = sshll.u32 [#allocation5], 4
      %s26 = int_to_ptr.vmem [resolvable:$true] %s25
      %31 = dma.hbm_to_vmem [thread:$0]  %s1, 1408, %s26, [#allocation6], 128, 128, 8
    $region9: #{tpu_custom_call.1} parent=1 // pred_fallthru
      _
    // Predicated region
    $region10: #{tpu_custom_call.1} parent=1 // pred_check
      _
    $region11: #{tpu_custom_call.1} parent=1 // pred_check_branch
      %33 = sbr.rel (0) target = $region13
    $region12: #{tpu_custom_call.1} parent=1 // pred_region
      %34 = dma.done [#allocation3], 128
    $region13: #{tpu_custom_call.1} parent=1 // pred_fallthru
      _
    // Predicated region
    $region14: #{tpu_custom_call.1} parent=1 // pred_check
      _
    $region15: #{tpu_custom_call.1} parent=1 // pred_check_branch
      %36 = sbr.rel (0) target = $region17
    $region16: #{tpu_custom_call.1} parent=1 // pred_region
      %37 = dma.done [#allocation6], 1408
    $region17: #{tpu_custom_call.1} parent=1 // pred_fallthru
      _
    %v38 = vld [vmem:[#allocation2] sm:$0xff]
    %v39 = vld [vmem:[#allocation5] sm:$0xff]
    %v40 = vld [vmem:[#allocation5 + $0x8] sm:$0xff]
    %v41 = vld [vmem:[#allocation5 + $0x10] sm:$0xff]
    %v42 = vld [vmem:[#allocation5 + $0x18] sm:$0xff]
    %v43 = vld [vmem:[#allocation5 + $0x20] sm:$0xff]
    %v44 = vld [vmem:[#allocation5 + $0x28] sm:$0xff]
    %v45 = vld [vmem:[#allocation5 + $0x30] sm:$0xff]
    %v46 = vld [vmem:[#allocation5 + $0x38] sm:$0xff]
    %v47 = vld [vmem:[#allocation5 + $0x40] sm:$0xff]
    %v48 = vld [vmem:[#allocation5 + $0x48] sm:$0xff]
    %v49 = vld [vmem:[#allocation5 + $0x50] sm:$0xf]
    %v50 = vmul.f32 %v38, %v38
    %vm51 = vcmask 687104
    %v52 = vsel %vm51, %v50, 0.0
    %53 = vadd.xlane.f32.xlu0 %v52
    %v54 = vpop.xlane.xlu0 %53
    %v56 = vsel %vm51, %v38, 0
    %vm58 = vcmask 1043456
    %v60 = vsel %vm58, %v49, 0
    %62 = vmatprep.subr.mxu0 0.0
    %63 = vmatpush1.msra.mxu0 0.0
    %64 = vmatprep.subr.mxu0 0.0
    %65 = vmatpush1.msra.mxu0 0.0
    %66 = vmatprep.subr.mxu0 0.0
    %67 = vmatpush1.msra.mxu0 0.0
    %68 = vmatprep.subr.mxu0 0.0
    %69 = vmatpush1.msra.mxu0 0.0
    %70 = vmatprep.subr.mxu0 0.0
    %71 = vmatpush1.msra.mxu0 0.0
    %72 = vmatprep.subr.mxu0 0.0
    %v73 = vand.u32 %v60, 4294901760
    %74 = vmatpush1.msra.mxu0 %v73
    %75 = vmatprep.subr.mxu0 0.0
    %v76 = vand.u32 %v48, 4294901760
    %77 = vmatpush1.msra.mxu0 %v76
    %78 = vmatprep.subr.mxu0 0.0
    %v79 = vand.u32 %v47, 4294901760
    %80 = vmatpush1.msra.mxu0 %v79
    %81 = vmatprep.subr.mxu0 0.0
    %v82 = vand.u32 %v46, 4294901760
    %83 = vmatpush1.msra.mxu0 %v82
    %84 = vmatprep.subr.mxu0 0.0
    %v85 = vand.u32 %v45, 4294901760
    %86 = vmatpush1.msra.mxu0 %v85
    %87 = vmatprep.subr.mxu0 0.0
    %v88 = vand.u32 %v44, 4294901760
    %89 = vmatpush1.msra.mxu0 %v88
    %90 = vmatprep.subr.mxu0 0.0
    %v91 = vand.u32 %v43, 4294901760
    %92 = vmatpush1.msra.mxu0 %v91
    %93 = vmatprep.subr.mxu0 0.0
    %v94 = vand.u32 %v42, 4294901760
    %95 = vmatpush1.msra.mxu0 %v94
    %96 = vmatprep.subr.mxu0 0.0
    %v97 = vand.u32 %v41, 4294901760
    %98 = vmatpush1.msra.mxu0 %v97
    %99 = vmatprep.subr.mxu0 0.0
    %v100 = vand.u32 %v40, 4294901760
    %101 = vmatpush1.msra.mxu0 %v100
    %102 = vmatprep.subr.mxu0 0.0
    %v103 = vand.u32 %v39, 4294901760
    %104 = vmatpush1.msra.mxu0 %v103
    %105 = vmatprep.subr.mxu0 0.0
    %106 = vmatpush2.msra.mxu0 0.0
    %107 = vmatprep.subr.mxu0 0.0
    %108 = vmatpush2.msra.mxu0 0.0
    %109 = vmatprep.subr.mxu0 0.0
    %110 = vmatpush2.msra.mxu0 0.0
    %111 = vmatprep.subr.mxu0 0.0
    %112 = vmatpush2.msra.mxu0 0.0
    %113 = vmatprep.subr.mxu0 0.0
    %114 = vmatpush2.msra.mxu0 0.0
    %115 = vmatprep.subr.mxu0 0.0
    %116 = vmatpush2.msra.mxu0 0.0
    %117 = vmatprep.subr.mxu0 0.0
    %118 = vmatpush2.msra.mxu0 0.0
    %119 = vmatprep.subr.mxu0 0.0
    %120 = vmatpush2.msra.mxu0 0.0
    %121 = vmatprep.subr.mxu0 0.0
    %122 = vmatpush2.msra.mxu0 0.0
    %123 = vmatprep.subr.mxu0 0.0
    %124 = vmatpush2.msra.mxu0 0.0
    %125 = vmatprep.subr.mxu0 0.0
    %126 = vmatpush2.msra.mxu0 0.0
    %127 = vmatprep.subr.mxu0 0.0
    %128 = vmatpush2.msra.mxu0 0.0
    %129 = vmatprep.subr.mxu0 0.0
    %130 = vmatpush2.msra.mxu0 0.0
    %131 = vmatprep.subr.mxu0 0.0
    %132 = vmatpush2.msra.mxu0 0.0
    %133 = vmatprep.subr.mxu0 0.0
    %134 = vmatpush2.msra.mxu0 0.0
    %135 = vmatprep.subr.mxu0 0.0
    %136 = vmatpush2.msra.mxu0 0.0
    %137 = vmatprep.mubr.f32.mxu0 0.0
    %v138 = vand.u32 %v56, 4294901760
    %v139 = vsub.f32 %v56, %v138
    %v140 = vand.u32 %v139, 4294901760
    %v141 = vsub.f32 %v139, %v140
    %v142 = vand.u32 %v141, 4294901760
    %143 = vmatmul.mubr.f32.gmra.mxu0 %v142
    %v144 = vpop.f32.mrf.mxu0
    %v145 = vadd.f32 0.0, %v144
    %v146 = vpop.f32.mrf.mxu0
    %147 = vdwg.mxu0
    %148 = vmatprep.subr.mxu0 0.0
    %149 = vmatpush1.msra.mxu0 0.0
    %150 = vmatprep.subr.mxu0 0.0
    %151 = vmatpush1.msra.mxu0 0.0
    %152 = vmatprep.subr.mxu0 0.0
    %153 = vmatpush1.msra.mxu0 0.0
    %154 = vmatprep.subr.mxu0 0.0
    %155 = vmatpush1.msra.mxu0 0.0
    %156 = vmatprep.subr.mxu0 0.0
    %157 = vmatpush1.msra.mxu0 0.0
    %158 = vmatprep.subr.mxu0 0.0
    %v159 = vand.u32 %v60, 4294901760
    %v160 = vsub.f32 %v60, %v159
    %v161 = vand.u32 %v160, 4294901760
    %v162 = vsub.f32 %v160, %v161
    %v163 = vand.u32 %v162, 4294901760
    %164 = vmatpush1.msra.mxu0 %v163
    %165 = vmatprep.subr.mxu0 0.0
    %v166 = vand.u32 %v48, 4294901760
    %v167 = vsub.f32 %v48, %v166
    %v168 = vand.u32 %v167, 4294901760
    %v169 = vsub.f32 %v167, %v168
    %v170 = vand.u32 %v169, 4294901760
    %171 = vmatpush1.msra.mxu0 %v170
    %172 = vmatprep.subr.mxu0 0.0
    %v173 = vand.u32 %v47, 4294901760
    %v174 = vsub.f32 %v47, %v173
    %v175 = vand.u32 %v174, 4294901760
    %v176 = vsub.f32 %v174, %v175
    %v177 = vand.u32 %v176, 4294901760
    %178 = vmatpush1.msra.mxu0 %v177
    %179 = vmatprep.subr.mxu0 0.0
    %v180 = vand.u32 %v46, 4294901760
    %v181 = vsub.f32 %v46, %v180
    %v182 = vand.u32 %v181, 4294901760
    %v183 = vsub.f32 %v181, %v182
    %v184 = vand.u32 %v183, 4294901760
    %185 = vmatpush1.msra.mxu0 %v184
    %186 = vmatprep.subr.mxu0 0.0
    %v187 = vand.u32 %v45, 4294901760
    %v188 = vsub.f32 %v45, %v187
    %v189 = vand.u32 %v188, 4294901760
    %v190 = vsub.f32 %v188, %v189
    %v191 = vand.u32 %v190, 4294901760
    %192 = vmatpush1.msra.mxu0 %v191
    %193 = vmatprep.subr.mxu0 0.0
    %v194 = vand.u32 %v44, 4294901760
    %v195 = vsub.f32 %v44, %v194
    %v196 = vand.u32 %v195, 4294901760
    %v197 = vsub.f32 %v195, %v196
    %v198 = vand.u32 %v197, 4294901760
    %199 = vmatpush1.msra.mxu0 %v198
    %200 = vmatprep.subr.mxu0 0.0
    %v201 = vand.u32 %v43, 4294901760
    %v202 = vsub.f32 %v43, %v201
    %v203 = vand.u32 %v202, 4294901760
    %v204 = vsub.f32 %v202, %v203
    %v205 = vand.u32 %v204, 4294901760
    %206 = vmatpush1.msra.mxu0 %v205
    %207 = vmatprep.subr.mxu0 0.0
    %v208 = vand.u32 %v42, 4294901760
    %v209 = vsub.f32 %v42, %v208
    %v210 = vand.u32 %v209, 4294901760
    %v211 = vsub.f32 %v209, %v210
    %v212 = vand.u32 %v211, 4294901760
    %213 = vmatpush1.msra.mxu0 %v212
    %214 = vmatprep.subr.mxu0 0.0
    %v215 = vand.u32 %v41, 4294901760
    %v216 = vsub.f32 %v41, %v215
    %v217 = vand.u32 %v216, 4294901760
    %v218 = vsub.f32 %v216, %v217
    %v219 = vand.u32 %v218, 4294901760
    %220 = vmatpush1.msra.mxu0 %v219
    %221 = vmatprep.subr.mxu0 0.0
    %v222 = vand.u32 %v40, 4294901760
    %v223 = vsub.f32 %v40, %v222
    %v224 = vand.u32 %v223, 4294901760
    %v225 = vsub.f32 %v223, %v224
    %v226 = vand.u32 %v225, 4294901760
    %227 = vmatpush1.msra.mxu0 %v226
    %228 = vmatprep.subr.mxu0 0.0
    %v229 = vand.u32 %v39, 4294901760
    %v230 = vsub.f32 %v39, %v229
    %v231 = vand.u32 %v230, 4294901760
    %v232 = vsub.f32 %v230, %v231
    %v233 = vand.u32 %v232, 4294901760
    %234 = vmatpush1.msra.mxu0 %v233
    %235 = vmatprep.subr.mxu0 0.0
    %236 = vmatpush2.msra.mxu0 0.0
    %237 = vmatprep.subr.mxu0 0.0
    %238 = vmatpush2.msra.mxu0 0.0
    %239 = vmatprep.subr.mxu0 0.0
    %240 = vmatpush2.msra.mxu0 0.0
    %241 = vmatprep.subr.mxu0 0.0
    %242 = vmatpush2.msra.mxu0 0.0
    %243 = vmatprep.subr.mxu0 0.0
    %244 = vmatpush2.msra.mxu0 0.0
    %245 = vmatprep.subr.mxu0 0.0
    %246 = vmatpush2.msra.mxu0 0.0
    %247 = vmatprep.subr.mxu0 0.0
    %248 = vmatpush2.msra.mxu0 0.0
    %249 = vmatprep.subr.mxu0 0.0
    %250 = vmatpush2.msra.mxu0 0.0
    %251 = vmatprep.subr.mxu0 0.0
    %252 = vmatpush2.msra.mxu0 0.0
    %253 = vmatprep.subr.mxu0 0.0
    %254 = vmatpush2.msra.mxu0 0.0
    %255 = vmatprep.subr.mxu0 0.0
    %256 = vmatpush2.msra.mxu0 0.0
    %257 = vmatprep.subr.mxu0 0.0
    %258 = vmatpush2.msra.mxu0 0.0
    %259 = vmatprep.subr.mxu0 0.0
    %260 = vmatpush2.msra.mxu0 0.0
    %261 = vmatprep.subr.mxu0 0.0
    %262 = vmatpush2.msra.mxu0 0.0
    %263 = vmatprep.subr.mxu0 0.0
    %264 = vmatpush2.msra.mxu0 0.0
    %265 = vmatprep.subr.mxu0 0.0
    %266 = vmatpush2.msra.mxu0 0.0
    %267 = vmatprep.mubr.f32.mxu0 0.0
    %v268 = vand.u32 %v56, 4294901760
    %269 = vmatmul.mubr.f32.gmra.mxu0 %v268
    %v270 = vpop.f32.mrf.mxu0
    %v271 = vadd.f32 %v145, %v270
    %v272 = vpop.f32.mrf.mxu0
    %273 = vdwg.mxu0
    %274 = vmatprep.subr.mxu0 0.0
    %275 = vmatpush1.msra.mxu0 0.0
    %276 = vmatprep.subr.mxu0 0.0
    %277 = vmatpush1.msra.mxu0 0.0
    %278 = vmatprep.subr.mxu0 0.0
    %279 = vmatpush1.msra.mxu0 0.0
    %280 = vmatprep.subr.mxu0 0.0
    %281 = vmatpush1.msra.mxu0 0.0
    %282 = vmatprep.subr.mxu0 0.0
    %283 = vmatpush1.msra.mxu0 0.0
    %284 = vmatprep.subr.mxu0 0.0
    %v285 = vand.u32 %v60, 4294901760
    %v286 = vsub.f32 %v60, %v285
    %287 = vmatpush1.msra.mxu0 %v286
    %288 = vmatprep.subr.mxu0 0.0
    %v289 = vand.u32 %v48, 4294901760
    %v290 = vsub.f32 %v48, %v289
    %291 = vmatpush1.msra.mxu0 %v290
    %292 = vmatprep.subr.mxu0 0.0
    %v293 = vand.u32 %v47, 4294901760
    %v294 = vsub.f32 %v47, %v293
    %295 = vmatpush1.msra.mxu0 %v294
    %296 = vmatprep.subr.mxu0 0.0
    %v297 = vand.u32 %v46, 4294901760
    %v298 = vsub.f32 %v46, %v297
    %299 = vmatpush1.msra.mxu0 %v298
    %300 = vmatprep.subr.mxu0 0.0
    %v301 = vand.u32 %v45, 4294901760
    %v302 = vsub.f32 %v45, %v301
    %303 = vmatpush1.msra.mxu0 %v302
    %304 = vmatprep.subr.mxu0 0.0
    %v305 = vand.u32 %v44, 4294901760
    %v306 = vsub.f32 %v44, %v305
    %307 = vmatpush1.msra.mxu0 %v306
    %308 = vmatprep.subr.mxu0 0.0
    %v309 = vand.u32 %v43, 4294901760
    %v310 = vsub.f32 %v43, %v309
    %311 = vmatpush1.msra.mxu0 %v310
    %312 = vmatprep.subr.mxu0 0.0
    %v313 = vand.u32 %v42, 4294901760
    %v314 = vsub.f32 %v42, %v313
    %315 = vmatpush1.msra.mxu0 %v314
    %316 = vmatprep.subr.mxu0 0.0
    %v317 = vand.u32 %v41, 4294901760
    %v318 = vsub.f32 %v41, %v317
    %319 = vmatpush1.msra.mxu0 %v318
    %320 = vmatprep.subr.mxu0 0.0
    %v321 = vand.u32 %v40, 4294901760
    %v322 = vsub.f32 %v40, %v321
    %323 = vmatpush1.msra.mxu0 %v322
    %324 = vmatprep.subr.mxu0 0.0
    %v325 = vand.u32 %v39, 4294901760
    %v326 = vsub.f32 %v39, %v325
    %327 = vmatpush1.msra.mxu0 %v326
    %328 = vmatprep.subr.mxu0 0.0
    %329 = vmatpush2.msra.mxu0 0.0
    %330 = vmatprep.subr.mxu0 0.0
    %331 = vmatpush2.msra.mxu0 0.0
    %332 = vmatprep.subr.mxu0 0.0
    %333 = vmatpush2.msra.mxu0 0.0
    %334 = vmatprep.subr.mxu0 0.0
    %335 = vmatpush2.msra.mxu0 0.0
    %336 = vmatprep.subr.mxu0 0.0
    %337 = vmatpush2.msra.mxu0 0.0
    %338 = vmatprep.subr.mxu0 0.0
    %339 = vmatpush2.msra.mxu0 0.0
    %340 = vmatprep.subr.mxu0 0.0
    %341 = vmatpush2.msra.mxu0 0.0
    %342 = vmatprep.subr.mxu0 0.0
    %343 = vmatpush2.msra.mxu0 0.0
    %344 = vmatprep.subr.mxu0 0.0
    %345 = vmatpush2.msra.mxu0 0.0
    %346 = vmatprep.subr.mxu0 0.0
    %347 = vmatpush2.msra.mxu0 0.0
    %348 = vmatprep.subr.mxu0 0.0
    %349 = vmatpush2.msra.mxu0 0.0
    %350 = vmatprep.subr.mxu0 0.0
    %351 = vmatpush2.msra.mxu0 0.0
    %352 = vmatprep.subr.mxu0 0.0
    %353 = vmatpush2.msra.mxu0 0.0
    %354 = vmatprep.subr.mxu0 0.0
    %355 = vmatpush2.msra.mxu0 0.0
    %356 = vmatprep.subr.mxu0 0.0
    %357 = vmatpush2.msra.mxu0 0.0
    %358 = vmatprep.subr.mxu0 0.0
    %359 = vmatpush2.msra.mxu0 0.0
    %360 = vmatprep.mubr.f32.mxu0 0.0
    %v361 = vand.u32 %v56, 4294901760
    %v362 = vsub.f32 %v56, %v361
    %363 = vmatmul.mubr.f32.gmra.mxu0 %v362
    %v364 = vpop.f32.mrf.mxu0
    %v365 = vadd.f32 %v271, %v364
    %v366 = vpop.f32.mrf.mxu0
    %367 = vdwg.mxu0
    %368 = vmatprep.subr.mxu0 0.0
    %369 = vmatpush1.msra.mxu0 0.0
    %370 = vmatprep.subr.mxu0 0.0
    %371 = vmatpush1.msra.mxu0 0.0
    %372 = vmatprep.subr.mxu0 0.0
    %373 = vmatpush1.msra.mxu0 0.0
    %374 = vmatprep.subr.mxu0 0.0
    %375 = vmatpush1.msra.mxu0 0.0
    %376 = vmatprep.subr.mxu0 0.0
    %377 = vmatpush1.msra.mxu0 0.0
    %378 = vmatprep.subr.mxu0 0.0
    %v379 = vand.u32 %v60, 4294901760
    %380 = vmatpush1.msra.mxu0 %v379
    %381 = vmatprep.subr.mxu0 0.0
    %v382 = vand.u32 %v48, 4294901760
    %383 = vmatpush1.msra.mxu0 %v382
    %384 = vmatprep.subr.mxu0 0.0
    %v385 = vand.u32 %v47, 4294901760
    %386 = vmatpush1.msra.mxu0 %v385
    %387 = vmatprep.subr.mxu0 0.0
    %v388 = vand.u32 %v46, 4294901760
    %389 = vmatpush1.msra.mxu0 %v388
    %390 = vmatprep.subr.mxu0 0.0
    %v391 = vand.u32 %v45, 4294901760
    %392 = vmatpush1.msra.mxu0 %v391
    %393 = vmatprep.subr.mxu0 0.0
    %v394 = vand.u32 %v44, 4294901760
    %395 = vmatpush1.msra.mxu0 %v394
    %396 = vmatprep.subr.mxu0 0.0
    %v397 = vand.u32 %v43, 4294901760
    %398 = vmatpush1.msra.mxu0 %v397
    %399 = vmatprep.subr.mxu0 0.0
    %v400 = vand.u32 %v42, 4294901760
    %401 = vmatpush1.msra.mxu0 %v400
    %402 = vmatprep.subr.mxu0 0.0
    %v403 = vand.u32 %v41, 4294901760
    %404 = vmatpush1.msra.mxu0 %v403
    %405 = vmatprep.subr.mxu0 0.0
    %v406 = vand.u32 %v40, 4294901760
    %407 = vmatpush1.msra.mxu0 %v406
    %408 = vmatprep.subr.mxu0 0.0
    %v409 = vand.u32 %v39, 4294901760
    %410 = vmatpush1.msra.mxu0 %v409
    %411 = vmatprep.subr.mxu0 0.0
    %412 = vmatpush2.msra.mxu0 0.0
    %413 = vmatprep.subr.mxu0 0.0
    %414 = vmatpush2.msra.mxu0 0.0
    %415 = vmatprep.subr.mxu0 0.0
    %416 = vmatpush2.msra.mxu0 0.0
    %417 = vmatprep.subr.mxu0 0.0
    %418 = vmatpush2.msra.mxu0 0.0
    %419 = vmatprep.subr.mxu0 0.0
    %420 = vmatpush2.msra.mxu0 0.0
    %421 = vmatprep.subr.mxu0 0.0
    %422 = vmatpush2.msra.mxu0 0.0
    %423 = vmatprep.subr.mxu0 0.0
    %424 = vmatpush2.msra.mxu0 0.0
    %425 = vmatprep.subr.mxu0 0.0
    %426 = vmatpush2.msra.mxu0 0.0
    %427 = vmatprep.subr.mxu0 0.0
    %428 = vmatpush2.msra.mxu0 0.0
    %429 = vmatprep.subr.mxu0 0.0
    %430 = vmatpush2.msra.mxu0 0.0
    %431 = vmatprep.subr.mxu0 0.0
    %432 = vmatpush2.msra.mxu0 0.0
    %433 = vmatprep.subr.mxu0 0.0
    %434 = vmatpush2.msra.mxu0 0.0
    %435 = vmatprep.subr.mxu0 0.0
    %436 = vmatpush2.msra.mxu0 0.0
    %437 = vmatprep.subr.mxu0 0.0
    %438 = vmatpush2.msra.mxu0 0.0
    %439 = vmatprep.subr.mxu0 0.0
    %440 = vmatpush2.msra.mxu0 0.0
    %441 = vmatprep.subr.mxu0 0.0
    %442 = vmatpush2.msra.mxu0 0.0
    %443 = vmatprep.mubr.f32.mxu0 0.0
    %v444 = vand.u32 %v56, 4294901760
    %v445 = vsub.f32 %v56, %v444
    %v446 = vand.u32 %v445, 4294901760
    %447 = vmatmul.mubr.f32.gmra.mxu0 %v446
    %v448 = vpop.f32.mrf.mxu0
    %v449 = vadd.f32 %v365, %v448
    %v450 = vpop.f32.mrf.mxu0
    %451 = vdwg.mxu0
    %452 = vmatprep.subr.mxu0 0.0
    %453 = vmatpush1.msra.mxu0 0.0
    %454 = vmatprep.subr.mxu0 0.0
    %455 = vmatpush1.msra.mxu0 0.0
    %456 = vmatprep.subr.mxu0 0.0
    %457 = vmatpush1.msra.mxu0 0.0
    %458 = vmatprep.subr.mxu0 0.0
    %459 = vmatpush1.msra.mxu0 0.0
    %460 = vmatprep.subr.mxu0 0.0
    %461 = vmatpush1.msra.mxu0 0.0
    %462 = vmatprep.subr.mxu0 0.0
    %v463 = vand.u32 %v60, 4294901760
    %v464 = vsub.f32 %v60, %v463
    %v465 = vand.u32 %v464, 4294901760
    %466 = vmatpush1.msra.mxu0 %v465
    %467 = vmatprep.subr.mxu0 0.0
    %v468 = vand.u32 %v48, 4294901760
    %v469 = vsub.f32 %v48, %v468
    %v470 = vand.u32 %v469, 4294901760
    %471 = vmatpush1.msra.mxu0 %v470
    %472 = vmatprep.subr.mxu0 0.0
    %v473 = vand.u32 %v47, 4294901760
    %v474 = vsub.f32 %v47, %v473
    %v475 = vand.u32 %v474, 4294901760
    %476 = vmatpush1.msra.mxu0 %v475
    %477 = vmatprep.subr.mxu0 0.0
    %v478 = vand.u32 %v46, 4294901760
    %v479 = vsub.f32 %v46, %v478
    %v480 = vand.u32 %v479, 4294901760
    %481 = vmatpush1.msra.mxu0 %v480
    %482 = vmatprep.subr.mxu0 0.0
    %v483 = vand.u32 %v45, 4294901760
    %v484 = vsub.f32 %v45, %v483
    %v485 = vand.u32 %v484, 4294901760
    %486 = vmatpush1.msra.mxu0 %v485
    %487 = vmatprep.subr.mxu0 0.0
    %v488 = vand.u32 %v44, 4294901760
    %v489 = vsub.f32 %v44, %v488
    %v490 = vand.u32 %v489, 4294901760
    %491 = vmatpush1.msra.mxu0 %v490
    %492 = vmatprep.subr.mxu0 0.0
    %v493 = vand.u32 %v43, 4294901760
    %v494 = vsub.f32 %v43, %v493
    %v495 = vand.u32 %v494, 4294901760
    %496 = vmatpush1.msra.mxu0 %v495
    %497 = vmatprep.subr.mxu0 0.0
    %v498 = vand.u32 %v42, 4294901760
    %v499 = vsub.f32 %v42, %v498
    %v500 = vand.u32 %v499, 4294901760
    %501 = vmatpush1.msra.mxu0 %v500
    %502 = vmatprep.subr.mxu0 0.0
    %v503 = vand.u32 %v41, 4294901760
    %v504 = vsub.f32 %v41, %v503
    %v505 = vand.u32 %v504, 4294901760
    %506 = vmatpush1.msra.mxu0 %v505
    %507 = vmatprep.subr.mxu0 0.0
    %v508 = vand.u32 %v40, 4294901760
    %v509 = vsub.f32 %v40, %v508
    %v510 = vand.u32 %v509, 4294901760
    %511 = vmatpush1.msra.mxu0 %v510
    %512 = vmatprep.subr.mxu0 0.0
    %v513 = vand.u32 %v39, 4294901760
    %v514 = vsub.f32 %v39, %v513
    %v515 = vand.u32 %v514, 4294901760
    %516 = vmatpush1.msra.mxu0 %v515
    %517 = vmatprep.subr.mxu0 0.0
    %518 = vmatpush2.msra.mxu0 0.0
    %519 = vmatprep.subr.mxu0 0.0
    %520 = vmatpush2.msra.mxu0 0.0
    %521 = vmatprep.subr.mxu0 0.0
    %522 = vmatpush2.msra.mxu0 0.0
    %523 = vmatprep.subr.mxu0 0.0
    %524 = vmatpush2.msra.mxu0 0.0
    %525 = vmatprep.subr.mxu0 0.0
    %526 = vmatpush2.msra.mxu0 0.0
    %527 = vmatprep.subr.mxu0 0.0
    %528 = vmatpush2.msra.mxu0 0.0
    %529 = vmatprep.subr.mxu0 0.0
    %530 = vmatpush2.msra.mxu0 0.0
    %531 = vmatprep.subr.mxu0 0.0
    %532 = vmatpush2.msra.mxu0 0.0
    %533 = vmatprep.subr.mxu0 0.0
    %534 = vmatpush2.msra.mxu0 0.0
    %535 = vmatprep.subr.mxu0 0.0
    %536 = vmatpush2.msra.mxu0 0.0
    %537 = vmatprep.subr.mxu0 0.0
    %538 = vmatpush2.msra.mxu0 0.0
    %539 = vmatprep.subr.mxu0 0.0
    %540 = vmatpush2.msra.mxu0 0.0
    %541 = vmatprep.subr.mxu0 0.0
    %542 = vmatpush2.msra.mxu0 0.0
    %543 = vmatprep.subr.mxu0 0.0
    %544 = vmatpush2.msra.mxu0 0.0
    %545 = vmatprep.subr.mxu0 0.0
    %546 = vmatpush2.msra.mxu0 0.0
    %547 = vmatprep.subr.mxu0 0.0
    %548 = vmatpush2.msra.mxu0 0.0
    %549 = vmatprep.mubr.f32.mxu0 0.0
    %v550 = vand.u32 %v56, 4294901760
    %551 = vmatmul.mubr.f32.gmra.mxu0 %v550
    %v552 = vpop.f32.mrf.mxu0
    %v553 = vadd.f32 %v449, %v552
    %v554 = vpop.f32.mrf.mxu0
    %555 = vdwg.mxu0
    %556 = vmatprep.subr.mxu0 0.0
    %557 = vmatpush1.msra.mxu0 0.0
    %558 = vmatprep.subr.mxu0 0.0
    %559 = vmatpush1.msra.mxu0 0.0
    %560 = vmatprep.subr.mxu0 0.0
    %561 = vmatpush1.msra.mxu0 0.0
    %562 = vmatprep.subr.mxu0 0.0
    %563 = vmatpush1.msra.mxu0 0.0
    %564 = vmatprep.subr.mxu0 0.0
    %565 = vmatpush1.msra.mxu0 0.0
    %566 = vmatprep.subr.mxu0 0.0
    %v567 = vand.u32 %v60, 4294901760
    %568 = vmatpush1.msra.mxu0 %v567
    %569 = vmatprep.subr.mxu0 0.0
    %v570 = vand.u32 %v48, 4294901760
    %571 = vmatpush1.msra.mxu0 %v570
    %572 = vmatprep.subr.mxu0 0.0
    %v573 = vand.u32 %v47, 4294901760
    %574 = vmatpush1.msra.mxu0 %v573
    %575 = vmatprep.subr.mxu0 0.0
    %v576 = vand.u32 %v46, 4294901760
    %577 = vmatpush1.msra.mxu0 %v576
    %578 = vmatprep.subr.mxu0 0.0
    %v579 = vand.u32 %v45, 4294901760
    %580 = vmatpush1.msra.mxu0 %v579
    %581 = vmatprep.subr.mxu0 0.0
    %v582 = vand.u32 %v44, 4294901760
    %583 = vmatpush1.msra.mxu0 %v582
    %584 = vmatprep.subr.mxu0 0.0
    %v585 = vand.u32 %v43, 4294901760
    %586 = vmatpush1.msra.mxu0 %v585
    %587 = vmatprep.subr.mxu0 0.0
    %v588 = vand.u32 %v42, 4294901760
    %589 = vmatpush1.msra.mxu0 %v588
    %590 = vmatprep.subr.mxu0 0.0
    %v591 = vand.u32 %v41, 4294901760
    %592 = vmatpush1.msra.mxu0 %v591
    %593 = vmatprep.subr.mxu0 0.0
    %v594 = vand.u32 %v40, 4294901760
    %595 = vmatpush1.msra.mxu0 %v594
    %596 = vmatprep.subr.mxu0 0.0
    %v597 = vand.u32 %v39, 4294901760
    %598 = vmatpush1.msra.mxu0 %v597
    %599 = vmatprep.subr.mxu0 0.0
    %600 = vmatpush2.msra.mxu0 0.0
    %601 = vmatprep.subr.mxu0 0.0
    %602 = vmatpush2.msra.mxu0 0.0
    %603 = vmatprep.subr.mxu0 0.0
    %604 = vmatpush2.msra.mxu0 0.0
    %605 = vmatprep.subr.mxu0 0.0
    %606 = vmatpush2.msra.mxu0 0.0
    %607 = vmatprep.subr.mxu0 0.0
    %608 = vmatpush2.msra.mxu0 0.0
    %609 = vmatprep.subr.mxu0 0.0
    %610 = vmatpush2.msra.mxu0 0.0
    %611 = vmatprep.subr.mxu0 0.0
    %612 = vmatpush2.msra.mxu0 0.0
    %613 = vmatprep.subr.mxu0 0.0
    %614 = vmatpush2.msra.mxu0 0.0
    %615 = vmatprep.subr.mxu0 0.0
    %616 = vmatpush2.msra.mxu0 0.0
    %617 = vmatprep.subr.mxu0 0.0
    %618 = vmatpush2.msra.mxu0 0.0
    %619 = vmatprep.subr.mxu0 0.0
    %620 = vmatpush2.msra.mxu0 0.0
    %621 = vmatprep.subr.mxu0 0.0
    %622 = vmatpush2.msra.mxu0 0.0
    %623 = vmatprep.subr.mxu0 0.0
    %624 = vmatpush2.msra.mxu0 0.0
    %625 = vmatprep.subr.mxu0 0.0
    %626 = vmatpush2.msra.mxu0 0.0
    %627 = vmatprep.subr.mxu0 0.0
    %628 = vmatpush2.msra.mxu0 0.0
    %629 = vmatprep.subr.mxu0 0.0
    %630 = vmatpush2.msra.mxu0 0.0
    %631 = vmatprep.mubr.f32.mxu0 0.0
    %v632 = vand.u32 %v56, 4294901760
    %633 = vmatmul.mubr.f32.gmra.mxu0 %v632
    %v634 = vpop.f32.mrf.mxu0
    %v635 = vadd.f32 %v553, %v634
    %v636 = vpop.f32.mrf.mxu0
    %637 = vdwg.mxu0
    %v638 = vadd.f32 %v54, 84.0
    %v639 = vmul.f32 %v635, 2.0
    %v640 = vsub.f32 %v638, %v639
    %v641 = vmax.f32 %v640, 0.0
    %v642 = vrsqrt.pop %v641
    %v643 = vmul.f32 %v641, %v642
    %vm644 = vcmp.eq.f32.partialorder %v641, inf
    %v645 = vsel %vm644, %v641, %v643
    %vm646 = vcmp.eq.f32.partialorder %v641, 0.0
    %v647 = vand.u32 %v641, 2147483648
    %v648 = vsel %vm646, %v647, %v645
    %vm649 = vcmask 80896
    %650 = vst.msk [vmem:[#allocation7] sm:$0xff] %vm649, %v648
    // Predicated region
    $region18: #{tpu_custom_call.1} parent=1 // pred_check
      _
    $region19: #{tpu_custom_call.1} parent=1 // pred_check_branch
      %652 = sbr.rel (0) target = $region21
    $region20: #{tpu_custom_call.1} parent=1 // pred_region
      %s654 = ssub.s32 128, 128
      %655 = vsyncadd [#allocation4], %s654
      %s657 = sshll.u32 [#allocation7], 4
      %s658 = int_to_ptr.vmem [resolvable:$true] %s657
      %660 = dma.vmem_to_hbm [thread:$0]  %s658, 128, %s2, [#allocation4]
    $region21: #{tpu_custom_call.1} parent=1 // pred_fallthru
      _
    // Predicated region
    $region22: #{tpu_custom_call.1} parent=1 // pred_check
      _
    $region23: #{tpu_custom_call.1} parent=1 // pred_check_branch
      %662 = sbr.rel (0) target = $region25
    $region24: #{tpu_custom_call.1} parent=1 // pred_region
      %663 = dma.done [#allocation4], 128
    $region25: #{tpu_custom_call.1} parent=1 // pred_fallthru
      _
    %664 = vsyncpa [#allocation3], 1
    %665 = vsyncpa [#allocation6], 1
    %666 = vsyncpa [#allocation4], 1

</llo_original>
